<compile_context>
chip_gen: v5e
topology: v5e:2x2
jax: 0.10.0
libtpu: 0.0.40
codegen_flags: <defaults>
</compile_context>

<pallas_src>
import jax
import jax.numpy as jnp
from jax.experimental import pallas as pl
from jax.experimental.pallas import tpu as pltpu

_PAD_OUT = 8  # 3 real head columns zero-padded to 8 lanes


def _round_up(n, m):
    return ((n + m - 1) // m) * m


def _controller_kernel(x_ref, w1_ref, b1_ref, w2_ref, b2_ref, w3_ref, b3_ref,
                       out_ref):
    # x_ref: (TB, H) f32; W* bf16; b* f32; out_ref: (TB, 8) f32.
    x = x_ref[...].astype(jnp.bfloat16)              # free VPU pack under MXU

    h1 = jnp.dot(x, w1_ref[...], preferred_element_type=jnp.float32)
    h1 = h1 + b1_ref[...]                            # (TB, C) + (1, C)
    h1 = jax.nn.gelu(h1, approximate=True)           # tanh GELU -> EUP
    h1 = h1.astype(jnp.bfloat16)

    h2 = jnp.dot(h1, w2_ref[...], preferred_element_type=jnp.float32)
    h2 = h2 + b2_ref[...]
    h2 = jax.nn.gelu(h2, approximate=True)
    h2 = h2.astype(jnp.bfloat16)

    logits = jnp.dot(h2, w3_ref[...], preferred_element_type=jnp.float32)
    logits = logits + b3_ref[...]                    # (TB, 8) zero-padded head

    out_ref[...] = jax.nn.sigmoid(logits)


def _choose_tb(B, block_b):
    """Batch tile size: no near-2x padding, >=2 grid steps for large B (v7x)."""
    if B <= 256:
        return _round_up(B, 8)                       # single small tile
    n_steps = max(2, pl.cdiv(B, block_b))            # 2 TCs on v7x
    return max(16, _round_up(pl.cdiv(B, n_steps), 16))


def dual_state_controller(x, params, *, block_b=1024):
    """x: (B, hidden_dim) float32.  Returns (superposition_degree,
    collapse_threshold, interference_strength), each (B, 1) float32."""
    w1, b1, w2, b2, w3p, b3p = params                # weights already bf16
    B, H = x.shape
    C = w1.shape[1]
    P = w3p.shape[1]                                 # 8

    tb = _choose_tb(B, block_b)
    grid = (pl.cdiv(B, tb),)

    # Rough VMEM footprint: double-buffered x/out tiles + resident weights +
    # f32 activation temporaries.  Only raise the scoped limit when needed
    # (v5e default is 16 MiB); clamp well under v7x's 64 MiB physical VMEM.
    est = (2 * tb * H * 4 + 2 * tb * P * 4           # x / out tiles (2-buf)
           + (H * C + C * C + C * P) * 2             # resident bf16 weights
           + (2 * C + P) * 4                         # biases
           + 2 * tb * C * 4)                         # activation temporaries
    vmem_limit = min(int(est * 1.5), 48 * 1024 * 1024) if est > 14 * 1024 * 1024 else None

    out = pl.pallas_call(
        _controller_kernel,
        out_shape=jax.ShapeDtypeStruct((B, P), jnp.float32),
        grid=grid,
        in_specs=[
            pl.BlockSpec((tb, H), lambda i: (i, 0)),      # x: tiled over batch
            pl.BlockSpec((H, C), lambda i: (0, 0)),       # W1: VMEM-resident
            pl.BlockSpec((1, C), lambda i: (0, 0)),       # b1
            pl.BlockSpec((C, C), lambda i: (0, 0)),       # W2
            pl.BlockSpec((1, C), lambda i: (0, 0)),       # b2
            pl.BlockSpec((C, P), lambda i: (0, 0)),       # W3 (padded head)
            pl.BlockSpec((1, P), lambda i: (0, 0)),       # b3 (padded head)
        ],
        out_specs=pl.BlockSpec((tb, P), lambda i: (i, 0)),
        compiler_params=pltpu.CompilerParams(
            dimension_semantics=("parallel",),
            vmem_limit_bytes=vmem_limit),
    )(x, w1, b1, w2, b2, w3p, b3p)

    head = out[:, :3]
    superposition_degree = head[:, 0:1]
    collapse_threshold = head[:, 1:2]
    interference_strength = head[:, 2:3]
    return superposition_degree, collapse_threshold, interference_strength


def init_params(key, hidden_dim, controller_dim=256, pad_out=_PAD_OUT):
    """Deterministic synthetic parameters (shapes mirror the PyTorch module).
    Weight matrices are stored in bf16 once here (MXU-native operands)."""
    k1, k2, k3, k4, k5, k6 = jax.random.split(key, 6)
    scale1 = 1.0 / jnp.sqrt(hidden_dim)
    scale2 = 1.0 / jnp.sqrt(controller_dim)

    w1 = jax.random.normal(k1, (hidden_dim, controller_dim), jnp.float32) * scale1
    b1 = jax.random.normal(k2, (1, controller_dim), jnp.float32) * 0.01
    w2 = jax.random.normal(k3, (controller_dim, controller_dim), jnp.float32) * scale2
    b2 = jax.random.normal(k4, (1, controller_dim), jnp.float32) * 0.01

    # Real head is (controller_dim, 3); zero-pad the output lanes to 8.
    w3 = jax.random.normal(k5, (controller_dim, 3), jnp.float32) * scale2
    b3 = jax.random.normal(k6, (1, 3), jnp.float32) * 0.01
    w3p = jnp.zeros((controller_dim, pad_out), jnp.float32).at[:, :3].set(w3)
    b3p = jnp.zeros((1, pad_out), jnp.float32).at[:, :3].set(b3)

    return (w1.astype(jnp.bfloat16), b1,
            w2.astype(jnp.bfloat16), b2,
            w3p.astype(jnp.bfloat16), b3p)


def _reference(x, params):
    """Pure-JAX f32 reference of the PyTorch forward (exact-erf GELU)."""
    w1, b1, w2, b2, w3p, b3p = params
    w1f, w2f, w3f = (w.astype(jnp.float32) for w in (w1, w2, w3p))
    h = jax.nn.gelu(x @ w1f + b1, approximate=False)
    h = jax.nn.gelu(h @ w2f + b2, approximate=False)
    logits = h @ w3f[:, :3] + b3p[:, :3]
    s = jax.nn.sigmoid(logits)
    return s[:, 0:1], s[:, 1:2], s[:, 2:3]


if __name__ == "__main__":
    hidden_dim = 32
    controller_dim = 256
    batch = 8

    key = jax.random.PRNGKey(0)
    kx, kp = jax.random.split(key)
    x = jax.random.normal(kx, (batch, hidden_dim), jnp.float32)
    params = init_params(kp, hidden_dim, controller_dim)

    sup, col, intf = dual_state_controller(x, params)
    jax.block_until_ready((sup, col, intf))

    assert sup.shape == (batch, 1)
    assert col.shape == (batch, 1)
    assert intf.shape == (batch, 1)
    assert bool(jnp.all((sup > 0) & (sup < 1)))
    assert bool(jnp.all((col > 0) & (col < 1)))
    assert bool(jnp.all((intf > 0) & (intf < 1)))

    # Numerical check vs. pure-JAX f32 exact-GELU reference.  bf16 matmul
    # operands + tanh-GELU give ~1e-3 level deviations; 2e-2 tolerance.
    rs, rc, ri = _reference(x, params)
    assert bool(jnp.max(jnp.abs(sup - rs)) < 2e-2)
    assert bool(jnp.max(jnp.abs(col - rc)) < 2e-2)
    assert bool(jnp.max(jnp.abs(intf - ri)) < 2e-2)

    print("KERNEL_OK")
</pallas_src>

<mosaic_0001>
module attributes {stable_mosaic.version = 11 : i64} {
  func.func @_controller_kernel(%arg0: i32, %arg1: memref<8x32xf32, #tpu.memory_space<vmem>>, %arg2: memref<32x256xbf16, #tpu.memory_space<vmem>>, %arg3: memref<1x256xf32, #tpu.memory_space<vmem>>, %arg4: memref<256x256xbf16, #tpu.memory_space<vmem>>, %arg5: memref<1x256xf32, #tpu.memory_space<vmem>>, %arg6: memref<256x8xbf16, #tpu.memory_space<vmem>>, %arg7: memref<1x8xf32, #tpu.memory_space<vmem>>, %arg8: memref<8x8xf32, #tpu.memory_space<vmem>>) attributes {dimension_semantics = [#tpu.dimension_semantics<parallel>], iteration_bounds = array<i64: 1>, scalar_prefetch = 0 : i64, scratch_operands = 0 : i64, tpu.core_type = #tpu.core_type<tc>, window_params = [{transform_indices = @transform_0, window_bounds = array<i64: 8, 32>}, {pipeline_mode = #tpu.pipeline_mode<synchronous>, transform_indices = @transform_1, window_bounds = array<i64: 32, 256>}, {pipeline_mode = #tpu.pipeline_mode<synchronous>, transform_indices = @transform_2, window_bounds = array<i64: 1, 256>}, {pipeline_mode = #tpu.pipeline_mode<synchronous>, transform_indices = @transform_3, window_bounds = array<i64: 256, 256>}, {pipeline_mode = #tpu.pipeline_mode<synchronous>, transform_indices = @transform_4, window_bounds = array<i64: 1, 256>}, {pipeline_mode = #tpu.pipeline_mode<synchronous>, transform_indices = @transform_5, window_bounds = array<i64: 256, 8>}, {pipeline_mode = #tpu.pipeline_mode<synchronous>, transform_indices = @transform_6, window_bounds = array<i64: 1, 8>}, {transform_indices = @transform_7, window_bounds = array<i64: 8, 8>}]} {
    %c0 = arith.constant 0 : index
    %c0_0 = arith.constant 0 : index
    %0 = vector.load %arg1[%c0, %c0_0] : memref<8x32xf32, #tpu.memory_space<vmem>>, vector<8x32xf32>
    %1 = arith.truncf %0 : vector<8x32xf32> to vector<8x32xbf16>
    %c0_1 = arith.constant 0 : index
    %c0_2 = arith.constant 0 : index
    %2 = vector.load %arg2[%c0_1, %c0_2] : memref<32x256xbf16, #tpu.memory_space<vmem>>, vector<32x256xbf16>
    %cst = arith.constant dense<0.000000e+00> : vector<8x256xf32>
    %3 = tpu.matmul %1, %2, %cst {dimension_numbers = #tpu.dot_dimension_numbers<[1], [0], [0], [1], [0, 0, 1, 1], [], []>} : vector<8x32xbf16>, vector<32x256xbf16>, vector<8x256xf32> -> vector<8x256xf32>
    %c0_3 = arith.constant 0 : index
    %c0_4 = arith.constant 0 : index
    %4 = vector.load %arg3[%c0_3, %c0_4] : memref<1x256xf32, #tpu.memory_space<vmem>>, vector<1x256xf32>
    %5 = vector.broadcast %4 : vector<1x256xf32> to vector<8x256xf32>
    %6 = arith.addf %3, %5 : vector<8x256xf32>
    %7 = arith.mulf %6, %6 : vector<8x256xf32>
    %8 = arith.mulf %6, %7 : vector<8x256xf32>
    %cst_5 = arith.constant 4.471500e-02 : f32
    %9 = vector.broadcast %cst_5 : f32 to vector<8x256xf32>
    %10 = arith.mulf %9, %8 : vector<8x256xf32>
    %11 = arith.addf %6, %10 : vector<8x256xf32>
    %cst_6 = arith.constant 0.797884583 : f32
    %12 = vector.broadcast %cst_6 : f32 to vector<8x256xf32>
    %13 = arith.mulf %12, %11 : vector<8x256xf32>
    %14 = math.tanh %13 : vector<8x256xf32>
    %cst_7 = arith.constant 1.000000e+00 : f32
    %15 = vector.broadcast %cst_7 : f32 to vector<8x256xf32>
    %16 = arith.addf %15, %14 : vector<8x256xf32>
    %cst_8 = arith.constant 5.000000e-01 : f32
    %17 = vector.broadcast %cst_8 : f32 to vector<8x256xf32>
    %18 = arith.mulf %17, %16 : vector<8x256xf32>
    %19 = arith.mulf %6, %18 : vector<8x256xf32>
    %20 = arith.truncf %19 : vector<8x256xf32> to vector<8x256xbf16>
    %c0_9 = arith.constant 0 : index
    %c0_10 = arith.constant 0 : index
    %21 = vector.load %arg4[%c0_9, %c0_10] : memref<256x256xbf16, #tpu.memory_space<vmem>>, vector<256x256xbf16>
    %cst_11 = arith.constant dense<0.000000e+00> : vector<8x256xf32>
    %22 = tpu.matmul %20, %21, %cst_11 {dimension_numbers = #tpu.dot_dimension_numbers<[1], [0], [0], [1], [0, 0, 1, 1], [], []>} : vector<8x256xbf16>, vector<256x256xbf16>, vector<8x256xf32> -> vector<8x256xf32>
    %c0_12 = arith.constant 0 : index
    %c0_13 = arith.constant 0 : index
    %23 = vector.load %arg5[%c0_12, %c0_13] : memref<1x256xf32, #tpu.memory_space<vmem>>, vector<1x256xf32>
    %24 = vector.broadcast %23 : vector<1x256xf32> to vector<8x256xf32>
    %25 = arith.addf %22, %24 : vector<8x256xf32>
    %26 = arith.mulf %25, %25 : vector<8x256xf32>
    %27 = arith.mulf %25, %26 : vector<8x256xf32>
    %cst_14 = arith.constant 4.471500e-02 : f32
    %28 = vector.broadcast %cst_14 : f32 to vector<8x256xf32>
    %29 = arith.mulf %28, %27 : vector<8x256xf32>
    %30 = arith.addf %25, %29 : vector<8x256xf32>
    %cst_15 = arith.constant 0.797884583 : f32
    %31 = vector.broadcast %cst_15 : f32 to vector<8x256xf32>
    %32 = arith.mulf %31, %30 : vector<8x256xf32>
    %33 = math.tanh %32 : vector<8x256xf32>
    %cst_16 = arith.constant 1.000000e+00 : f32
    %34 = vector.broadcast %cst_16 : f32 to vector<8x256xf32>
    %35 = arith.addf %34, %33 : vector<8x256xf32>
    %cst_17 = arith.constant 5.000000e-01 : f32
    %36 = vector.broadcast %cst_17 : f32 to vector<8x256xf32>
    %37 = arith.mulf %36, %35 : vector<8x256xf32>
    %38 = arith.mulf %25, %37 : vector<8x256xf32>
    %39 = arith.truncf %38 : vector<8x256xf32> to vector<8x256xbf16>
    %c0_18 = arith.constant 0 : index
    %c0_19 = arith.constant 0 : index
    %40 = vector.load %arg6[%c0_18, %c0_19] : memref<256x8xbf16, #tpu.memory_space<vmem>>, vector<256x8xbf16>
    %cst_20 = arith.constant dense<0.000000e+00> : vector<8x8xf32>
    %41 = tpu.matmul %39, %40, %cst_20 {dimension_numbers = #tpu.dot_dimension_numbers<[1], [0], [0], [1], [0, 0, 1, 1], [], []>} : vector<8x256xbf16>, vector<256x8xbf16>, vector<8x8xf32> -> vector<8x8xf32>
    %c0_21 = arith.constant 0 : index
    %c0_22 = arith.constant 0 : index
    %42 = vector.load %arg7[%c0_21, %c0_22] : memref<1x8xf32, #tpu.memory_space<vmem>>, vector<1x8xf32>
    %43 = vector.broadcast %42 : vector<1x8xf32> to vector<8x8xf32>
    %44 = arith.addf %41, %43 : vector<8x8xf32>
    %45 = arith.negf %44 : vector<8x8xf32>
    %46 = math.exp %45 : vector<8x8xf32>
    %cst_23 = arith.constant 1.000000e+00 : f32
    %47 = vector.broadcast %cst_23 : f32 to vector<8x8xf32>
    %48 = arith.addf %47, %46 : vector<8x8xf32>
    %49 = arith.divf %47, %48 : vector<8x8xf32>
    %c0_24 = arith.constant 0 : index
    %c0_25 = arith.constant 0 : index
    %50 = vector.load %arg8[%c0_24, %c0_25] : memref<8x8xf32, #tpu.memory_space<vmem>>, vector<8x8xf32>
    tpu.vector_store %arg8[%c0_24, %c0_25], %49 {strides = array<i32>} : memref<8x8xf32, #tpu.memory_space<vmem>>, vector<8x8xf32>,
    return
  }
  func.func @transform_0(%arg0: i32) -> (i32, i32) {
    %c0_i32 = arith.constant 0 : i32
    %c0_i32_0 = arith.constant 0 : i32
    return %arg0, %c0_i32 : i32, i32
  }
  func.func @transform_1(%arg0: i32) -> (i32, i32) {
    %c0_i32 = arith.constant 0 : i32
    %c0_i32_0 = arith.constant 0 : i32
    %c0_i32_1 = arith.constant 0 : i32
    return %c0_i32, %c0_i32_0 : i32, i32
  }
  func.func @transform_2(%arg0: i32) -> (i32, i32) {
    %c0_i32 = arith.constant 0 : i32
    %c0_i32_0 = arith.constant 0 : i32
    %c0_i32_1 = arith.constant 0 : i32
    return %c0_i32, %c0_i32_0 : i32, i32
  }
  func.func @transform_3(%arg0: i32) -> (i32, i32) {
    %c0_i32 = arith.constant 0 : i32
    %c0_i32_0 = arith.constant 0 : i32
    %c0_i32_1 = arith.constant 0 : i32
    return %c0_i32, %c0_i32_0 : i32, i32
  }
  func.func @transform_4(%arg0: i32) -> (i32, i32) {
    %c0_i32 = arith.constant 0 : i32
    %c0_i32_0 = arith.constant 0 : i32
    %c0_i32_1 = arith.constant 0 : i32
    return %c0_i32, %c0_i32_0 : i32, i32
  }
  func.func @transform_5(%arg0: i32) -> (i32, i32) {
    %c0_i32 = arith.constant 0 : i32
    %c0_i32_0 = arith.constant 0 : i32
    %c0_i32_1 = arith.constant 0 : i32
    return %c0_i32, %c0_i32_0 : i32, i32
  }
  func.func @transform_6(%arg0: i32) -> (i32, i32) {
    %c0_i32 = arith.constant 0 : i32
    %c0_i32_0 = arith.constant 0 : i32
    %c0_i32_1 = arith.constant 0 : i32
    return %c0_i32, %c0_i32_0 : i32, i32
  }
  func.func @transform_7(%arg0: i32) -> (i32, i32) {
    %c0_i32 = arith.constant 0 : i32
    %c0_i32_0 = arith.constant 0 : i32
    return %arg0, %c0_i32 : i32, i32
  }
}

</mosaic_0001>

<llo_original>
// kernel: tpu_custom_call.1
$region0: #{tpu_custom_call.1}
  #allocation0 [shape = 'u32[]', space=smem, size = 0x4, offset = 0x4, fixed_abs, tag = 'smem constant byte address 0x4 - core index']
  #allocation1 [shape = 'u32[72,128]{1,0:T(1,128)}', space=vmem, size = 0x9000, scoped, tag = 'internal scratch']
  %s0 = inlined_call_operand.vmem [shape: f32[8,32], index: 0, kind: input, shape index: {}]
  %s1 = inlined_call_operand.vmem [shape: bf16[32,256], index: 1, kind: input, shape index: {}]
  %s2 = inlined_call_operand.vmem [shape: f32[1,256], index: 2, kind: input, shape index: {}]
  %s3 = inlined_call_operand.hbm [shape: bf16[256,256], index: 3, kind: input, shape index: {}]
  %s4 = inlined_call_operand.vmem [shape: f32[1,256], index: 4, kind: input, shape index: {}]
  %s5 = inlined_call_operand.vmem [shape: bf16[256,8], index: 5, kind: input, shape index: {}]
  %s6 = inlined_call_operand.vmem [shape: f32[1,8], index: 6, kind: input, shape index: {}]
  %s7 = inlined_call_operand.hbm [shape: f32[8,8], index: 7, kind: output, shape index: {}]
  %s8 = sld [smem:[#allocation0]]
  $region42: #{tpu_custom_call.1} parent=0
    _
  %s10 = ssub.s32 1, %s8
  %s11 = scalar_select 0, %s10, %s8
  $region1: #{tpu_custom_call.1} parent=0
    #allocation2 [shape = 'u8[131072]{0}', space=vmem, size = 0x20000, scoped, tag = 'input window, operand 3, single buffered']
    #allocation3 [shape = 's32[1]{0}', space=sflag, size = 0x4, scoped, tag = 'scoped memory for tpu_custom_call.1']
    #allocation4 [shape = 's32[1]{0}', space=sflag, size = 0x4, scoped, tag = 'scoped memory for tpu_custom_call.1']
    #allocation5 [shape = 'u8[4096]{0}', space=vmem, size = 0x1000, scoped, tag = 'output window, operand 0, single buffered']
    %12 = vsyncpa [#allocation3], 0
    %13 = vsyncpa [#allocation4], 0
    // Predicated region
    $region2: #{tpu_custom_call.1} parent=1 // pred_check
      _
    $region3: #{tpu_custom_call.1} parent=1 // pred_check_branch
      %15 = sbr.rel (0) target = $region5
    $region4: #{tpu_custom_call.1} parent=1 // pred_region
      _
    $region5: #{tpu_custom_call.1} parent=1 // pred_fallthru
      _
    // Predicated region
    $region6: #{tpu_custom_call.1} parent=1 // pred_check
      _
    $region7: #{tpu_custom_call.1} parent=1 // pred_check_branch
      %17 = sbr.rel (0) target = $region9
    $region8: #{tpu_custom_call.1} parent=1 // pred_region
      _
    $region9: #{tpu_custom_call.1} parent=1 // pred_fallthru
      _
    // Predicated region
    $region10: #{tpu_custom_call.1} parent=1 // pred_check
      _
    $region11: #{tpu_custom_call.1} parent=1 // pred_check_branch
      %19 = sbr.rel (0) target = $region13
    $region12: #{tpu_custom_call.1} parent=1 // pred_region
      _
    $region13: #{tpu_custom_call.1} parent=1 // pred_fallthru
      _
    // Predicated region
    $region14: #{tpu_custom_call.1} parent=1 // pred_check
      _
    $region15: #{tpu_custom_call.1} parent=1 // pred_check_branch
      %21 = sbr.rel (0) target = $region17
    $region16: #{tpu_custom_call.1} parent=1 // pred_region
      %23 = vsyncadd [#allocation3], 0
      %s24 = sshll.u32 %s3, 4
      %s25 = int_to_ptr.hbm [resolvable:$true] %s24
      %s26 = sshll.u32 [#allocation2], 4
      %s27 = int_to_ptr.vmem [resolvable:$true] %s26
      %32 = dma.hbm_to_vmem [thread:$0]  %s25, 4096, %s27, [#allocation3], 128, 128, 8
    $region17: #{tpu_custom_call.1} parent=1 // pred_fallthru
      _
    // Predicated region
    $region18: #{tpu_custom_call.1} parent=1 // pred_check
      _
    $region19: #{tpu_custom_call.1} parent=1 // pred_check_branch
      %34 = sbr.rel (0) target = $region21
    $region20: #{tpu_custom_call.1} parent=1 // pred_region
      _
    $region21: #{tpu_custom_call.1} parent=1 // pred_fallthru
      _
    // Predicated region
    $region22: #{tpu_custom_call.1} parent=1 // pred_check
      _
    $region23: #{tpu_custom_call.1} parent=1 // pred_check_branch
      %36 = sbr.rel (0) target = $region25
    $region24: #{tpu_custom_call.1} parent=1 // pred_region
      _
    $region25: #{tpu_custom_call.1} parent=1 // pred_fallthru
      _
    // Predicated region
    $region26: #{tpu_custom_call.1} parent=1 // pred_check
      _
    $region27: #{tpu_custom_call.1} parent=1 // pred_check_branch
      %38 = sbr.rel (0) target = $region29
    $region28: #{tpu_custom_call.1} parent=1 // pred_region
      _
    $region29: #{tpu_custom_call.1} parent=1 // pred_fallthru
      _
    // Predicated region
    $region30: #{tpu_custom_call.1} parent=1 // pred_check
      _
    $region31: #{tpu_custom_call.1} parent=1 // pred_check_branch
      %40 = sbr.rel (0) target = $region33
    $region32: #{tpu_custom_call.1} parent=1 // pred_region
      %42 = dma.done [#allocation3], 4096
    $region33: #{tpu_custom_call.1} parent=1 // pred_fallthru
      _
    %v44 = vld [vmem:[%s0] sm:$0xff]
    %v45 = vpack.c.bf16 %v44, %v44
    %v46 = vld [vmem:[%s1] sm:$0xff]
    %v47 = vld [vmem:[%s1 + $0x8] sm:$0xff]
    %v48 = vld [vmem:[%s1 + $0x10] sm:$0xff]
    %v49 = vld [vmem:[%s1 + $0x18] sm:$0xff]
    %v50 = vld [vmem:[%s2] sm:$0x3]
    %v52 = vperm.slane %v50, 0
    %v53 = vperm.slane %v50, 1
    %v60 = vunpack.c.l.b16 %v46
    %v61 = vunpack.c.h.b16 %v46
    %v62 = vunpack.c.l.b16 %v47
    %v63 = vunpack.c.h.b16 %v47
    %v64 = vunpack.c.l.b16 %v48
    %v65 = vunpack.c.h.b16 %v48
    %v66 = vunpack.c.l.b16 %v49
    %v67 = vunpack.c.h.b16 %v49
    %v68 = vpack.c.b16 %v62, %v60
    %v69 = vpack.c.b16 %v63, %v61
    %v70 = vpack.c.b16 %v66, %v64
    %v71 = vpack.c.b16 %v67, %v65
    %vm76 = vcmask 261120
    %v78 = vsel %vm76, %v45, 0
    %80 = vmatpush.bf16.msra.mxu0 0
    %81 = vmatpush.bf16.msra.mxu0 0
    %82 = vmatpush.bf16.msra.mxu0 0
    %83 = vmatpush.bf16.msra.mxu0 0
    %84 = vmatpush.bf16.msra.mxu0 0
    %85 = vmatpush.bf16.msra.mxu0 0
    %86 = vmatpush.bf16.msra.mxu0 %v70
    %87 = vmatpush.bf16.msra.mxu0 %v68
    %88 = vmatmul.bf16.gmra.mxu0 %v78
    %v89 = vpop.f32.mrf.mxu0
    %v90 = vadd.f32 %v52, %v89
    %v91 = vpop.f32.mrf.mxu0
    %92 = vdwg.mxu0
    %93 = vmatpush.bf16.msra.mxu0 0
    %94 = vmatpush.bf16.msra.mxu0 0
    %95 = vmatpush.bf16.msra.mxu0 0
    %96 = vmatpush.bf16.msra.mxu0 0
    %97 = vmatpush.bf16.msra.mxu0 0
    %98 = vmatpush.bf16.msra.mxu0 0
    %99 = vmatpush.bf16.msra.mxu0 %v71
    %100 = vmatpush.bf16.msra.mxu0 %v69
    %101 = vmatmul.bf16.gmra.mxu0 %v78
    %v102 = vpop.f32.mrf.mxu0
    %v103 = vadd.f32 %v53, %v102
    %v104 = vpop.f32.mrf.mxu0
    %105 = vdwg.mxu0
    %v106 = vmul.f32 %v90, %v90
    %v107 = vmul.f32 %v103, %v103
    %v108 = vmul.f32 %v90, %v106
    %v109 = vmul.f32 %v103, %v107
    %v110 = vmul.f32 %v108, 0.044715
    %v111 = vmul.f32 %v109, 0.044715
    %v112 = vadd.f32 %v90, %v110
    %v113 = vadd.f32 %v103, %v111
    %v114 = vmul.f32 %v112, 0.7978846
    %v115 = vmul.f32 %v113, 0.7978846
    %v116 = vtanh.pop %v114
    %v117 = vtanh.pop %v115
    %v118 = vadd.f32 %v116, 1.0
    %v119 = vadd.f32 %v117, 1.0
    %v120 = vmul.f32 %v118, 0.5
    %v121 = vmul.f32 %v119, 0.5
    %v122 = vmul.f32 %v90, %v120
    %v123 = vmul.f32 %v103, %v121
    %v124 = vpack.c.bf16 %v122, %v122
    %v125 = vpack.c.bf16 %v123, %v123
    %v126 = vld [vmem:[#allocation2] sm:$0xff]
    %v127 = vld [vmem:[#allocation2 + $0x8] sm:$0xff]
    %v128 = vld [vmem:[#allocation2 + $0x10] sm:$0xff]
    %v129 = vld [vmem:[#allocation2 + $0x18] sm:$0xff]
    %v130 = vld [vmem:[#allocation2 + $0x20] sm:$0xff]
    %v131 = vld [vmem:[#allocation2 + $0x28] sm:$0xff]
    %v132 = vld [vmem:[#allocation2 + $0x30] sm:$0xff]
    %v133 = vld [vmem:[#allocation2 + $0x38] sm:$0xff]
    %v134 = vld [vmem:[#allocation2 + $0x40] sm:$0xff]
    %v135 = vld [vmem:[#allocation2 + $0x48] sm:$0xff]
    %v136 = vld [vmem:[#allocation2 + $0x50] sm:$0xff]
    %v137 = vld [vmem:[#allocation2 + $0x58] sm:$0xff]
    %v138 = vld [vmem:[#allocation2 + $0x60] sm:$0xff]
    %v139 = vld [vmem:[#allocation2 + $0x68] sm:$0xff]
    %v140 = vld [vmem:[#allocation2 + $0x70] sm:$0xff]
    %v141 = vld [vmem:[#allocation2 + $0x78] sm:$0xff]
    %v142 = vld [vmem:[#allocation2 + $0x80] sm:$0xff]
    %v143 = vld [vmem:[#allocation2 + $0x88] sm:$0xff]
    %v144 = vld [vmem:[#allocation2 + $0x90] sm:$0xff]
    %v145 = vld [vmem:[#allocation2 + $0x98] sm:$0xff]
    %v146 = vld [vmem:[#allocation2 + $0xa0] sm:$0xff]
    %v147 = vld [vmem:[#allocation2 + $0xa8] sm:$0xff]
    %v148 = vld [vmem:[#allocation2 + $0xb0] sm:$0xff]
    %v149 = vld [vmem:[#allocation2 + $0xb8] sm:$0xff]
    %v150 = vld [vmem:[#allocation2 + $0xc0] sm:$0xff]
    %v151 = vld [vmem:[#allocation2 + $0xc8] sm:$0xff]
    %v152 = vld [vmem:[#allocation2 + $0xd0] sm:$0xff]
    %v153 = vld [vmem:[#allocation2 + $0xd8] sm:$0xff]
    %v154 = vld [vmem:[#allocation2 + $0xe0] sm:$0xff]
    %v155 = vld [vmem:[#allocation2 + $0xe8] sm:$0xff]
    %v156 = vld [vmem:[#allocation2 + $0xf0] sm:$0xff]
    %v157 = vld [vmem:[#allocation2 + $0xf8] sm:$0xff]
    %v158 = vld [vmem:[%s4] sm:$0x3]
    %v160 = vperm.slane %v158, 0
    %v161 = vperm.slane %v158, 1
    %v196 = vunpack.c.l.b16 %v126
    %v197 = vunpack.c.h.b16 %v126
    %v198 = vunpack.c.l.b16 %v127
    %v199 = vunpack.c.h.b16 %v127
    %v200 = vunpack.c.l.b16 %v128
    %v201 = vunpack.c.h.b16 %v128
    %v202 = vunpack.c.l.b16 %v129
    %v203 = vunpack.c.h.b16 %v129
    %v204 = vunpack.c.l.b16 %v130
    %v205 = vunpack.c.h.b16 %v130
    %v206 = vunpack.c.l.b16 %v131
    %v207 = vunpack.c.h.b16 %v131
    %v208 = vunpack.c.l.b16 %v132
    %v209 = vunpack.c.h.b16 %v132
    %v210 = vunpack.c.l.b16 %v133
    %v211 = vunpack.c.h.b16 %v133
    %v212 = vunpack.c.l.b16 %v134
    %v213 = vunpack.c.h.b16 %v134
    %v214 = vunpack.c.l.b16 %v135
    %v215 = vunpack.c.h.b16 %v135
    %v216 = vunpack.c.l.b16 %v136
    %v217 = vunpack.c.h.b16 %v136
    %v218 = vunpack.c.l.b16 %v137
    %v219 = vunpack.c.h.b16 %v137
    %v220 = vunpack.c.l.b16 %v138
    %v221 = vunpack.c.h.b16 %v138
    %v222 = vunpack.c.l.b16 %v139
    %v223 = vunpack.c.h.b16 %v139
    %v224 = vunpack.c.l.b16 %v140
    %v225 = vunpack.c.h.b16 %v140
    %v226 = vunpack.c.l.b16 %v141
    %v227 = vunpack.c.h.b16 %v141
    %v228 = vunpack.c.l.b16 %v142
    %v229 = vunpack.c.h.b16 %v142
    %v230 = vunpack.c.l.b16 %v143
    %v231 = vunpack.c.h.b16 %v143
    %v232 = vunpack.c.l.b16 %v144
    %v233 = vunpack.c.h.b16 %v144
    %v234 = vunpack.c.l.b16 %v145
    %v235 = vunpack.c.h.b16 %v145
    %v236 = vunpack.c.l.b16 %v146
    %v237 = vunpack.c.h.b16 %v146
    %v238 = vunpack.c.l.b16 %v147
    %v239 = vunpack.c.h.b16 %v147
    %v240 = vunpack.c.l.b16 %v148
    %v241 = vunpack.c.h.b16 %v148
    %v242 = vunpack.c.l.b16 %v149
    %v243 = vunpack.c.h.b16 %v149
    %v244 = vunpack.c.l.b16 %v150
    %v245 = vunpack.c.h.b16 %v150
    %v246 = vunpack.c.l.b16 %v151
    %v247 = vunpack.c.h.b16 %v151
    %v248 = vunpack.c.l.b16 %v152
    %v249 = vunpack.c.h.b16 %v152
    %v250 = vunpack.c.l.b16 %v153
    %v251 = vunpack.c.h.b16 %v153
    %v252 = vunpack.c.l.b16 %v154
    %v253 = vunpack.c.h.b16 %v154
    %v254 = vunpack.c.l.b16 %v155
    %v255 = vunpack.c.h.b16 %v155
    %v256 = vunpack.c.l.b16 %v156
    %v257 = vunpack.c.h.b16 %v156
    %v258 = vunpack.c.l.b16 %v157
    %v259 = vunpack.c.h.b16 %v157
    %v260 = vpack.c.b16 %v198, %v196
    %v261 = vpack.c.b16 %v199, %v197
    %v262 = vpack.c.b16 %v202, %v200
    %v263 = vpack.c.b16 %v203, %v201
    %v264 = vpack.c.b16 %v206, %v204
    %v265 = vpack.c.b16 %v207, %v205
    %v266 = vpack.c.b16 %v210, %v208
    %v267 = vpack.c.b16 %v211, %v209
    %v268 = vpack.c.b16 %v214, %v212
    %v269 = vpack.c.b16 %v215, %v213
    %v270 = vpack.c.b16 %v218, %v216
    %v271 = vpack.c.b16 %v219, %v217
    %v272 = vpack.c.b16 %v222, %v220
    %v273 = vpack.c.b16 %v223, %v221
    %v274 = vpack.c.b16 %v226, %v224
    %v275 = vpack.c.b16 %v227, %v225
    %v276 = vpack.c.b16 %v230, %v228
    %v277 = vpack.c.b16 %v231, %v229
    %v278 = vpack.c.b16 %v234, %v232
    %v279 = vpack.c.b16 %v235, %v233
    %v280 = vpack.c.b16 %v238, %v236
    %v281 = vpack.c.b16 %v239, %v237
    %v282 = vpack.c.b16 %v242, %v240
    %v283 = vpack.c.b16 %v243, %v241
    %v284 = vpack.c.b16 %v246, %v244
    %v285 = vpack.c.b16 %v247, %v245
    %v286 = vpack.c.b16 %v250, %v248
    %v287 = vpack.c.b16 %v251, %v249
    %v288 = vpack.c.b16 %v254, %v252
    %v289 = vpack.c.b16 %v255, %v253
    %v290 = vpack.c.b16 %v258, %v256
    %v291 = vpack.c.b16 %v259, %v257
    %324 = vmatpush.bf16.msra.mxu0 %v274
    %325 = vmatpush.bf16.msra.mxu0 %v272
    %326 = vmatpush.bf16.msra.mxu0 %v270
    %327 = vmatpush.bf16.msra.mxu0 %v268
    %328 = vmatpush.bf16.msra.mxu0 %v266
    %329 = vmatpush.bf16.msra.mxu0 %v264
    %330 = vmatpush.bf16.msra.mxu0 %v262
    %331 = vmatpush.bf16.msra.mxu0 %v260
    %332 = vmatmul.bf16.gmra.mxu0 %v124
    %v333 = vpop.f32.mrf.mxu0
    %v334 = vadd.f32 %v160, %v333
    %v335 = vpop.f32.mrf.mxu0
    %336 = vdwg.mxu0
    %337 = vmatpush.bf16.msra.mxu0 %v290
    %338 = vmatpush.bf16.msra.mxu0 %v288
    %339 = vmatpush.bf16.msra.mxu0 %v286
    %340 = vmatpush.bf16.msra.mxu0 %v284
    %341 = vmatpush.bf16.msra.mxu0 %v282
    %342 = vmatpush.bf16.msra.mxu0 %v280
    %343 = vmatpush.bf16.msra.mxu0 %v278
    %344 = vmatpush.bf16.msra.mxu0 %v276
    %345 = vmatmul.bf16.gmra.mxu0 %v125
    %v346 = vpop.f32.mrf.mxu0
    %v347 = vadd.f32 %v334, %v346
    %v348 = vpop.f32.mrf.mxu0
    %349 = vdwg.mxu0
    %350 = vmatpush.bf16.msra.mxu0 %v275
    %351 = vmatpush.bf16.msra.mxu0 %v273
    %352 = vmatpush.bf16.msra.mxu0 %v271
    %353 = vmatpush.bf16.msra.mxu0 %v269
    %354 = vmatpush.bf16.msra.mxu0 %v267
    %355 = vmatpush.bf16.msra.mxu0 %v265
    %356 = vmatpush.bf16.msra.mxu0 %v263
    %357 = vmatpush.bf16.msra.mxu0 %v261
    %358 = vmatmul.bf16.gmra.mxu0 %v124
    %v359 = vpop.f32.mrf.mxu0
    %v360 = vadd.f32 %v161, %v359
    %v361 = vpop.f32.mrf.mxu0
    %362 = vdwg.mxu0
    %363 = vmatpush.bf16.msra.mxu0 %v291
    %364 = vmatpush.bf16.msra.mxu0 %v289
    %365 = vmatpush.bf16.msra.mxu0 %v287
    %366 = vmatpush.bf16.msra.mxu0 %v285
    %367 = vmatpush.bf16.msra.mxu0 %v283
    %368 = vmatpush.bf16.msra.mxu0 %v281
    %369 = vmatpush.bf16.msra.mxu0 %v279
    %370 = vmatpush.bf16.msra.mxu0 %v277
    %371 = vmatmul.bf16.gmra.mxu0 %v125
    %v372 = vpop.f32.mrf.mxu0
    %v373 = vadd.f32 %v360, %v372
    %v374 = vpop.f32.mrf.mxu0
    %375 = vdwg.mxu0
    %v376 = vmul.f32 %v347, %v347
    %v377 = vmul.f32 %v373, %v373
    %v378 = vmul.f32 %v347, %v376
    %v379 = vmul.f32 %v373, %v377
    %v380 = vmul.f32 %v378, 0.044715
    %v381 = vmul.f32 %v379, 0.044715
    %v382 = vadd.f32 %v347, %v380
    %v383 = vadd.f32 %v373, %v381
    %v384 = vmul.f32 %v382, 0.7978846
    %v385 = vmul.f32 %v383, 0.7978846
    %v386 = vtanh.pop %v384
    %v387 = vtanh.pop %v385
    %v388 = vadd.f32 %v386, 1.0
    %v389 = vadd.f32 %v387, 1.0
    %v390 = vmul.f32 %v388, 0.5
    %v391 = vmul.f32 %v389, 0.5
    %v392 = vmul.f32 %v347, %v390
    %v393 = vmul.f32 %v373, %v391
    %v394 = vpack.c.bf16 %v392, %v392
    %v395 = vpack.c.bf16 %v393, %v393
    %v396 = vld [vmem:[%s5] sm:$0xf]
    %v397 = vld [vmem:[%s5 + $0x4] sm:$0xf]
    %v398 = vld [vmem:[%s5 + $0x8] sm:$0xf]
    %v399 = vld [vmem:[%s5 + $0xc] sm:$0xf]
    %v400 = vld [vmem:[%s5 + $0x10] sm:$0xf]
    %v401 = vld [vmem:[%s5 + $0x14] sm:$0xf]
    %v402 = vld [vmem:[%s5 + $0x18] sm:$0xf]
    %v403 = vld [vmem:[%s5 + $0x1c] sm:$0xf]
    %v404 = vld [vmem:[%s5 + $0x20] sm:$0xf]
    %v405 = vld [vmem:[%s5 + $0x24] sm:$0xf]
    %v406 = vld [vmem:[%s5 + $0x28] sm:$0xf]
    %v407 = vld [vmem:[%s5 + $0x2c] sm:$0xf]
    %v408 = vld [vmem:[%s5 + $0x30] sm:$0xf]
    %v409 = vld [vmem:[%s5 + $0x34] sm:$0xf]
    %v410 = vld [vmem:[%s5 + $0x38] sm:$0xf]
    %v411 = vld [vmem:[%s5 + $0x3c] sm:$0xf]
    %v412 = vld [vmem:[%s5 + $0x40] sm:$0xf]
    %v413 = vld [vmem:[%s5 + $0x44] sm:$0xf]
    %v414 = vld [vmem:[%s5 + $0x48] sm:$0xf]
    %v415 = vld [vmem:[%s5 + $0x4c] sm:$0xf]
    %v416 = vld [vmem:[%s5 + $0x50] sm:$0xf]
    %v417 = vld [vmem:[%s5 + $0x54] sm:$0xf]
    %v418 = vld [vmem:[%s5 + $0x58] sm:$0xf]
    %v419 = vld [vmem:[%s5 + $0x5c] sm:$0xf]
    %v420 = vld [vmem:[%s5 + $0x60] sm:$0xf]
    %v421 = vld [vmem:[%s5 + $0x64] sm:$0xf]
    %v422 = vld [vmem:[%s5 + $0x68] sm:$0xf]
    %v423 = vld [vmem:[%s5 + $0x6c] sm:$0xf]
    %v424 = vld [vmem:[%s5 + $0x70] sm:$0xf]
    %v425 = vld [vmem:[%s5 + $0x74] sm:$0xf]
    %v426 = vld [vmem:[%s5 + $0x78] sm:$0xf]
    %v427 = vld [vmem:[%s5 + $0x7c] sm:$0xf]
    %v428 = vld [vmem:[%s6] sm:$0x1]
    %v430 = vperm.slane %v428, 0
    %v464 = vunpack.c.l.b16 %v396
    %v465 = vunpack.c.l.b16 %v397
    %v466 = vunpack.c.l.b16 %v398
    %v467 = vunpack.c.l.b16 %v399
    %v468 = vunpack.c.l.b16 %v400
    %v469 = vunpack.c.l.b16 %v401
    %v470 = vunpack.c.l.b16 %v402
    %v471 = vunpack.c.l.b16 %v403
    %v472 = vunpack.c.l.b16 %v404
    %v473 = vunpack.c.l.b16 %v405
    %v474 = vunpack.c.l.b16 %v406
    %v475 = vunpack.c.l.b16 %v407
    %v476 = vunpack.c.l.b16 %v408
    %v477 = vunpack.c.l.b16 %v409
    %v478 = vunpack.c.l.b16 %v410
    %v479 = vunpack.c.l.b16 %v411
    %v480 = vunpack.c.l.b16 %v412
    %v481 = vunpack.c.l.b16 %v413
    %v482 = vunpack.c.l.b16 %v414
    %v483 = vunpack.c.l.b16 %v415
    %v484 = vunpack.c.l.b16 %v416
    %v485 = vunpack.c.l.b16 %v417
    %v486 = vunpack.c.l.b16 %v418
    %v487 = vunpack.c.l.b16 %v419
    %v488 = vunpack.c.l.b16 %v420
    %v489 = vunpack.c.l.b16 %v421
    %v490 = vunpack.c.l.b16 %v422
    %v491 = vunpack.c.l.b16 %v423
    %v492 = vunpack.c.l.b16 %v424
    %v493 = vunpack.c.l.b16 %v425
    %v494 = vunpack.c.l.b16 %v426
    %v495 = vunpack.c.l.b16 %v427
    %v496 = vpack.c.b16 %v465, %v464
    %v497 = vpack.c.b16 %v467, %v466
    %v498 = vpack.c.b16 %v469, %v468
    %v499 = vpack.c.b16 %v471, %v470
    %v500 = vpack.c.b16 %v473, %v472
    %v501 = vpack.c.b16 %v475, %v474
    %v502 = vpack.c.b16 %v477, %v476
    %v503 = vpack.c.b16 %v479, %v478
    %v504 = vpack.c.b16 %v481, %v480
    %v505 = vpack.c.b16 %v483, %v482
    %v506 = vpack.c.b16 %v485, %v484
    %v507 = vpack.c.b16 %v487, %v486
    %v508 = vpack.c.b16 %v489, %v488
    %v509 = vpack.c.b16 %v491, %v490
    %v510 = vpack.c.b16 %v493, %v492
    %v511 = vpack.c.b16 %v495, %v494
    %528 = vmatpush.bf16.msra.mxu0 %v503
    %529 = vmatpush.bf16.msra.mxu0 %v502
    %530 = vmatpush.bf16.msra.mxu0 %v501
    %531 = vmatpush.bf16.msra.mxu0 %v500
    %532 = vmatpush.bf16.msra.mxu0 %v499
    %533 = vmatpush.bf16.msra.mxu0 %v498
    %534 = vmatpush.bf16.msra.mxu0 %v497
    %535 = vmatpush.bf16.msra.mxu0 %v496
    %536 = vmatmul.bf16.gmra.mxu0 %v394
    %v537 = vpop.f32.mrf.mxu0
    %v538 = vadd.f32 %v430, %v537
    %v539 = vpop.f32.mrf.mxu0
    %540 = vdwg.mxu0
    %541 = vmatpush.bf16.msra.mxu0 %v511
    %542 = vmatpush.bf16.msra.mxu0 %v510
    %543 = vmatpush.bf16.msra.mxu0 %v509
    %544 = vmatpush.bf16.msra.mxu0 %v508
    %545 = vmatpush.bf16.msra.mxu0 %v507
    %546 = vmatpush.bf16.msra.mxu0 %v506
    %547 = vmatpush.bf16.msra.mxu0 %v505
    %548 = vmatpush.bf16.msra.mxu0 %v504
    %549 = vmatmul.bf16.gmra.mxu0 %v395
    %v550 = vpop.f32.mrf.mxu0
    %v551 = vadd.f32 %v538, %v550
    %v552 = vpop.f32.mrf.mxu0
    %553 = vdwg.mxu0
    %v554 = vxor.u32 %v551, 2147483648
    %v555 = vmul.f32 %v554, 1.442695
    %v556 = vpow.pop %v555
    %v557 = vadd.f32 %v556, 1.0
    %v558 = vrcp.pop %v557
    %v559 = vmul.f32 %v557, %v558
    %v560 = vsub.f32 1.0, %v559
    %v561 = vmul.f32 %v558, %v560
    %v562 = vadd.f32 %v558, %v561
    %vm563 = vweird.f32 %v557
    %vm564 = vweird.f32 %v558
    %vm565 = vmor %vm563, %vm564
    %v566 = vsel %vm565, %v558, %v562
    %v567 = vand.u32 2147483647, %v557
    %vm568 = vcmp.eq.f32.partialorder %v567, 8.507059e+37
    %v569 = vand.u32 %v557, 2147483648
    %v570 = vor.u32 1.1754944e-38, %v569
    %v571 = vsel %vm568, %v570, %v566
    %v572 = vmul.f32 1.0, %v571
    %vm573 = vcmask 64512
    %574 = vst.msk [vmem:[#allocation5] sm:$0xff] %vm573, %v572
    // Predicated region
    $region34: #{tpu_custom_call.1} parent=1 // pred_check
      _
    $region35: #{tpu_custom_call.1} parent=1 // pred_check_branch
      %576 = sbr.rel (0) target = $region37
    $region36: #{tpu_custom_call.1} parent=1 // pred_region
      %578 = vsyncadd [#allocation4], 0
      %s580 = sshll.u32 [#allocation5], 4
      %s581 = int_to_ptr.vmem [resolvable:$true] %s580
      %s582 = sshll.u32 %s7, 4
      %s583 = int_to_ptr.hbm [resolvable:$true] %s582
      %585 = dma.vmem_to_hbm [thread:$0]  %s581, 128, %s583, [#allocation4]
    $region37: #{tpu_custom_call.1} parent=1 // pred_fallthru
      _
    // Predicated region
    $region38: #{tpu_custom_call.1} parent=1 // pred_check
      _
    $region39: #{tpu_custom_call.1} parent=1 // pred_check_branch
      %587 = sbr.rel (0) target = $region41
    $region40: #{tpu_custom_call.1} parent=1 // pred_region
      %589 = dma.done [#allocation4], 128
    $region41: #{tpu_custom_call.1} parent=1 // pred_fallthru
      _
    %590 = vsyncpa [#allocation3], 1
    %591 = vsyncpa [#allocation4], 1

</llo_original>
